<compile_context>
chip_gen: v5e
topology: v5e:2x2
jax: 0.10.0
libtpu: 0.0.40
codegen_flags: <defaults>
</compile_context>

<pallas_src>
import functools

import jax
import jax.numpy as jnp
from jax.experimental import pallas as pl
from jax.experimental.pallas import tpu as pltpu


def _fold_max(x_ref, acc, valid, tile):
    """Fold columns [0, valid) of x_ref (Bt, C, tile) into acc (Bt, C, 128).

    Pure VPU work (per-128-lane-group element-wise max on ref-sliced loads).
    A cross-lane reduce is used only for a sub-128 remainder when `tile`
    itself is not a multiple of 128 (the tile == HW case), and the masked
    `where` path is used only for the partial group of a masked last step.
    """
    nfull = valid // 128
    part = valid - nfull * 128
    m = acc
    if nfull > 0:
        if nfull <= 8:
            for g in range(nfull):
                m = jnp.maximum(m, x_ref[:, :, g * 128:(g + 1) * 128])
        else:
            def body(g, cur):
                start = pl.multiple_of(g * 128, 128)
                return jnp.maximum(cur, x_ref[:, :, pl.ds(start, 128)])
            m = jax.lax.fori_loop(0, nfull, body, m, unroll=8)
    if part:
        if (nfull + 1) * 128 <= tile:
            # Partial group of a masked last step: columns >= `part` hold
            # stale VMEM (possibly NaN); select replaces them before the max.
            xg = x_ref[:, :, nfull * 128:(nfull + 1) * 128]
            col = jax.lax.broadcasted_iota(jnp.int32, xg.shape, 2)
            neg = jnp.array(-jnp.inf, dtype=xg.dtype)
            m = jnp.maximum(m, jnp.where(col < part, xg, neg))
        else:
            # tile == HW with HW % 128 != 0: in-bounds tail, reduce it once.
            tail = jnp.max(x_ref[:, :, nfull * 128:], axis=-1, keepdims=True)
            m = jnp.maximum(m, tail)
    return m


def _soft_attn_kernel(x_ref, w1_ref, b1_ref, w2_ref, b2_ref, o_ref, acc_ref,
                      *, tile, last_valid, bt):
    """One (batch-block, hw-tile) grid step.

    x_ref:   (Bt, C, TILE) activation block (input dtype)
    w1_ref:  (Cr, C)  folded conv1+bn1 weight (f32)
    b1_ref:  (Cr, 1)  folded conv1+bn1 bias   (f32)
    w2_ref:  (C, Cr)  folded conv2+bn2 weight (f32)
    b2_ref:  (C, 1)   folded conv2+bn2 bias   (f32)
    o_ref:   (Bt, C, 1) sigmoid attention output (f32)
    acc_ref: (Bt, C, 128) running per-channel max (VMEM scratch, input dtype)
    """
    k = pl.program_id(1)
    num_k = pl.num_programs(1)

    @pl.when(k == 0)
    def _init():
        acc_ref[...] = jnp.full_like(acc_ref, -jnp.inf)

    if last_valid == tile:
        # HW divides evenly (or a single full block): no masking anywhere.
        acc_ref[...] = _fold_max(x_ref, acc_ref[...], tile, tile)
    else:
        # Mask work only on the final HW step; all other steps are pure
        # vld + vmax (keeps VALU pressure low on v7x's 3.2 TB/s inflow).
        @pl.when(k == num_k - 1)
        def _fold_last():
            acc_ref[...] = _fold_max(x_ref, acc_ref[...], last_valid, tile)

        @pl.when(k < num_k - 1)
        def _fold_body():
            acc_ref[...] = _fold_max(x_ref, acc_ref[...], tile, tile)

    @pl.when(k == num_k - 1)
    def _epilogue():
        w1 = w1_ref[...]
        b1 = b1_ref[...]
        w2 = w2_ref[...]
        b2 = b2_ref[...]
        for b in range(bt):  # Bt is small and static -> unrolled
            pooled = jnp.max(acc_ref[b], axis=-1,
                             keepdims=True).astype(jnp.float32)       # (C, 1)
            h = jnp.dot(w1, pooled,
                        preferred_element_type=jnp.float32) + b1       # (Cr,1)
            h = jnp.maximum(h, 0.0)
            y = jnp.dot(w2, h,
                        preferred_element_type=jnp.float32) + b2       # (C, 1)
            o_ref[b] = jax.nn.sigmoid(y)


def fold_bn(w, b, gamma, beta, mean, var, eps=1e-5):
    """Fold eval-mode BatchNorm into a 1x1 conv: returns (w', b')."""
    scale = gamma / jnp.sqrt(var + eps)          # (out_c,)
    w_f = w * scale[:, None]
    b_f = (b - mean) * scale + beta
    return w_f, b_f


def _vmem_limit_bytes():
    """Generation-aware scoped-VMEM request (v7x: 64 MiB phys, v5e/v6e: 128)."""
    try:
        phys = int(pltpu.get_tpu_info().vmem_capacity_bytes)
    except Exception:
        phys = 64 << 20                      # conservative (v7x-sized)
    if phys <= (64 << 20):
        return 32 << 20                      # v7x default scoped limit
    return min(64 << 20, phys // 2)          # v5e/v6e: raise it


def _choose_hw_tile(hw, c, itemsize, target_block_bytes):
    """HW tile sized by bytes: lane-dense (mult. of 128) or the full extent."""
    max_lanes = max(128, (target_block_bytes // max(c * itemsize, 1)) // 128 * 128)
    if hw <= max_lanes:
        return hw                            # whole spatial extent per block
    for t in range(max_lanes, max(127, max_lanes // 2), -128):
        if hw % t == 0:                      # prefer an exact divisor
            return t
    return max_lanes                         # masked (gated) partial last tile


def _choose_bt(b, c, tile, itemsize, target_block_bytes, num_k):
    """Batch several images per block when HW fits in one tile and is small."""
    if num_k > 1 or b <= 1:
        return 1
    per_image = c * tile * itemsize
    cap = max(1, int(target_block_bytes // max(per_image, 1)))
    cap = min(cap, max(1, b // 2))           # keep >=2 parallel blocks (2 TCs)
    bt = 1
    for d in range(1, cap + 1):
        if b % d == 0:
            bt = d
    return bt


def soft_attn(x_nchw, params, *, hw_tile=None, batch_block=None):
    """x_nchw: (B, C, H, W) float32/bf16.  Returns (B, C, 1, 1) attention."""
    B, C, H, W = x_nchw.shape
    HW = H * W
    Cr = params["w1"].shape[0]

    # Fold BN (eval mode) into the 1x1 convs (plain-JAX glue on tiny tensors).
    w1f, b1f = fold_bn(params["w1"], params["b1"], params["g1"], params["be1"],
                       params["m1"], params["v1"])
    w2f, b2f = fold_bn(params["w2"], params["b2"], params["g2"], params["be2"],
                       params["m2"], params["v2"])

    # Free, contiguous reshape of NCHW -> (B, C, H*W); keep the producer dtype
    # (bf16 streams at half the HBM bytes).
    x_flat = x_nchw.reshape(B, C, HW)
    itemsize = jnp.dtype(x_flat.dtype).itemsize

    w1_k = w1f.astype(jnp.float32)                 # (Cr, C)
    w2_k = w2f.astype(jnp.float32)                 # (C, Cr)
    b1_k = b1f.reshape(Cr, 1).astype(jnp.float32)  # (Cr, 1)
    b2_k = b2f.reshape(C, 1).astype(jnp.float32)   # (C, 1)

    vmem_limit = _vmem_limit_bytes()
    target_block_bytes = min(4 << 20, max(512 << 10, vmem_limit // 8))

    tile = hw_tile if hw_tile is not None else _choose_hw_tile(
        HW, C, itemsize, target_block_bytes)
    assert tile <= HW, "HW tile must not exceed the spatial extent"
    assert tile == HW or tile % 128 == 0, "HW tile must be 128-aligned or full"
    num_k = -(-HW // tile)
    last_valid = HW - (num_k - 1) * tile

    bt = batch_block if batch_block is not None else _choose_bt(
        B, C, tile, itemsize, target_block_bytes, num_k)
    assert B % bt == 0, "batch block must divide the batch size"

    kernel = functools.partial(_soft_attn_kernel, tile=tile,
                               last_valid=last_valid, bt=bt)

    flops = 2 * B * (C * Cr + Cr * C)
    bytes_accessed = (x_flat.size * itemsize
                      + (w1_k.size + w2_k.size + b1_k.size + b2_k.size
                         + B * C) * 4)

    out = pl.pallas_call(
        kernel,
        out_shape=jax.ShapeDtypeStruct((B, C, 1), jnp.float32),
        grid_spec=pltpu.PrefetchScalarGridSpec(
            num_scalar_prefetch=0,
            grid=(B // bt, num_k),
            in_specs=[
                pl.BlockSpec((bt, C, tile), lambda b, k: (b, 0, k)),
                pl.BlockSpec((Cr, C), lambda b, k: (0, 0)),
                pl.BlockSpec((Cr, 1), lambda b, k: (0, 0)),
                pl.BlockSpec((C, Cr), lambda b, k: (0, 0)),
                pl.BlockSpec((C, 1), lambda b, k: (0, 0)),
            ],
            out_specs=pl.BlockSpec((bt, C, 1), lambda b, k: (b, 0, 0)),
            scratch_shapes=[pltpu.VMEM((bt, C, 128), x_flat.dtype)],
        ),
        compiler_params=pltpu.CompilerParams(
            dimension_semantics=("parallel", "arbitrary"),
            vmem_limit_bytes=vmem_limit,
        ),
        cost_estimate=pl.CostEstimate(
            flops=flops, transcendentals=B * C, bytes_accessed=bytes_accessed),
    )(x_flat, w1_k, b1_k, w2_k, b2_k)

    return out.reshape(B, C, 1, 1)


def make_params(key, C, reduction=4):
    Cr = C // reduction
    ks = jax.random.split(key, 4)
    # conv weights (out_c, in_c) — 1x1 kernels squeezed; biases; BN affine+stats
    return {
        "w1": jax.random.normal(ks[0], (Cr, C), jnp.float32) * 0.2,
        "b1": jax.random.normal(ks[1], (Cr,), jnp.float32) * 0.1,
        "g1": jnp.ones((Cr,), jnp.float32) * 1.1,
        "be1": jnp.full((Cr,), 0.05, jnp.float32),
        "m1": jnp.zeros((Cr,), jnp.float32),
        "v1": jnp.ones((Cr,), jnp.float32),
        "w2": jax.random.normal(ks[2], (C, Cr), jnp.float32) * 0.2,
        "b2": jax.random.normal(ks[3], (C,), jnp.float32) * 0.1,
        "g2": jnp.ones((C,), jnp.float32) * 0.9,
        "be2": jnp.full((C,), -0.02, jnp.float32),
        "m2": jnp.zeros((C,), jnp.float32),
        "v2": jnp.ones((C,), jnp.float32),
    }


def reference(x_nchw, params):
    """Pure-JAX reference (same eval-mode BN semantics)."""
    pooled = jnp.max(x_nchw, axis=(2, 3))                      # (B, C)
    w1f, b1f = fold_bn(params["w1"], params["b1"], params["g1"], params["be1"],
                       params["m1"], params["v1"])
    w2f, b2f = fold_bn(params["w2"], params["b2"], params["g2"], params["be2"],
                       params["m2"], params["v2"])
    h = jnp.maximum(pooled @ w1f.T + b1f, 0.0)
    y = jax.nn.sigmoid(h @ w2f.T + b2f)
    return y.reshape(*y.shape, 1, 1)


if __name__ == "__main__":
    key = jax.random.PRNGKey(0)
    kx1, kp1, kx2, kp2, kx3, kp3 = jax.random.split(key, 6)

    # Case 1: multi-step HW reduction (accumulator carried across the grid).
    B, C, H, W = 2, 16, 32, 32
    x = jax.random.normal(kx1, (B, C, H, W), jnp.float32)
    params = make_params(kp1, C)
    out = jax.block_until_ready(soft_attn(x, params, hw_tile=256))
    ref = reference(x, params)
    assert out.shape == (B, C, 1, 1)
    assert jnp.allclose(out, ref, atol=1e-5, rtol=1e-5), "mismatch (case 1)"

    # Case 1b: default auto blocking — whole HW in a single block per image.
    out_b = jax.block_until_ready(soft_attn(x, params))
    assert jnp.allclose(out_b, ref, atol=1e-5, rtol=1e-5), "mismatch (case 1b)"

    # Case 2: uneven spatial extent (HW=400, tile=128) -> gated masked last step.
    B2, C2, H2, W2 = 2, 32, 20, 20
    x2 = jax.random.normal(kx2, (B2, C2, H2, W2), jnp.float32)
    params2 = make_params(kp2, C2)
    out2 = jax.block_until_ready(soft_attn(x2, params2, hw_tile=128))
    ref2 = reference(x2, params2)
    assert out2.shape == (B2, C2, 1, 1)
    assert jnp.allclose(out2, ref2, atol=1e-5, rtol=1e-5), "mismatch (case 2)"

    # Case 3: bf16 streaming + several images batched per block (small HW).
    B3, C3, H3, W3 = 8, 8, 8, 8
    x3 = jax.random.normal(kx3, (B3, C3, H3, W3), jnp.float32).astype(jnp.bfloat16)
    params3 = make_params(kp3, C3)
    out3 = jax.block_until_ready(soft_attn(x3, params3))
    ref3 = reference(x3.astype(jnp.float32), params3)
    assert out3.shape == (B3, C3, 1, 1)
    assert jnp.allclose(out3, ref3, atol=3e-5, rtol=3e-5), "mismatch (case 3)"

    # Case 4: large tile (nfull > 8 -> fori_loop lane-group fold).
    B4, C4, H4, W4 = 2, 16, 64, 64
    x4 = jax.random.normal(kx1, (B4, C4, H4, W4), jnp.float32)
    params4 = make_params(kp1, C4)
    out4 = jax.block_until_ready(soft_attn(x4, params4, hw_tile=2048))
    ref4 = reference(x4, params4)
    assert jnp.allclose(out4, ref4, atol=1e-5, rtol=1e-5), "mismatch (case 4)"

    print("KERNEL_OK")
</pallas_src>

<mosaic_0001>
module attributes {stable_mosaic.version = 11 : i64} {
  func.func @_soft_attn_kernel(%arg0: i32, %arg1: i32, %arg2: memref<1x16x256xf32, #tpu.memory_space<vmem>>, %arg3: memref<4x16xf32, #tpu.memory_space<vmem>>, %arg4: memref<4x1xf32, #tpu.memory_space<vmem>>, %arg5: memref<16x4xf32, #tpu.memory_space<vmem>>, %arg6: memref<16x1xf32, #tpu.memory_space<vmem>>, %arg7: memref<1x16x1xf32, #tpu.memory_space<vmem>>, %arg8: memref<1x16x128xf32, #tpu.memory_space<vmem>>) attributes {dimension_semantics = [#tpu.dimension_semantics<parallel>, #tpu.dimension_semantics<arbitrary>], iteration_bounds = array<i64: 2, 4>, scalar_prefetch = 0 : i64, scratch_operands = 1 : i64, tpu.core_type = #tpu.core_type<tc>, window_params = [{transform_indices = @transform_0, window_bounds = array<i64: 1, 16, 256>}, {pipeline_mode = #tpu.pipeline_mode<synchronous>, transform_indices = @transform_1, window_bounds = array<i64: 4, 16>}, {pipeline_mode = #tpu.pipeline_mode<synchronous>, transform_indices = @transform_2, window_bounds = array<i64: 4, 1>}, {pipeline_mode = #tpu.pipeline_mode<synchronous>, transform_indices = @transform_3, window_bounds = array<i64: 16, 4>}, {pipeline_mode = #tpu.pipeline_mode<synchronous>, transform_indices = @transform_4, window_bounds = array<i64: 16, 1>}, {transform_indices = @transform_5, window_bounds = array<i64: 1, 16, 1>}]} {
    %c0_i32 = arith.constant 0 : i32
    %0 = arith.cmpi eq, %arg1, %c0_i32 : i32
    %1 = arith.extui %0 : i1 to i32
    %c0_i32_0 = arith.constant 0 : i32
    %2 = arith.cmpi ne, %1, %c0_i32_0 : i32
    scf.if %2 {
      %cst = arith.constant 0xFF800000 : f32
      %12 = vector.broadcast %cst : f32 to vector<1x16x128xf32>
      %c0_12 = arith.constant 0 : index
      %c0_13 = arith.constant 0 : index
      %c0_14 = arith.constant 0 : index
      %13 = vector.load %arg8[%c0_12, %c0_13, %c0_14] : memref<1x16x128xf32, #tpu.memory_space<vmem>>, vector<1x16x128xf32>
      tpu.vector_store %arg8[%c0_12, %c0_13, %c0_14], %12 {strides = array<i32>} : memref<1x16x128xf32, #tpu.memory_space<vmem>>, vector<1x16x128xf32>,
    } else {
    }
    %c0 = arith.constant 0 : index
    %c0_1 = arith.constant 0 : index
    %c0_2 = arith.constant 0 : index
    %3 = vector.load %arg8[%c0, %c0_1, %c0_2] : memref<1x16x128xf32, #tpu.memory_space<vmem>>, vector<1x16x128xf32>
    %c0_3 = arith.constant 0 : index
    %c0_4 = arith.constant 0 : index
    %c0_5 = arith.constant 0 : index
    %4 = vector.load %arg2[%c0_3, %c0_4, %c0_5] : memref<1x16x256xf32, #tpu.memory_space<vmem>>, vector<1x16x128xf32>
    %5 = arith.maximumf %3, %4 : vector<1x16x128xf32>
    %c0_6 = arith.constant 0 : index
    %c0_7 = arith.constant 0 : index
    %c128 = arith.constant 128 : index
    %6 = vector.load %arg2[%c0_6, %c0_7, %c128] : memref<1x16x256xf32, #tpu.memory_space<vmem>>, vector<1x16x128xf32>
    %7 = arith.maximumf %5, %6 : vector<1x16x128xf32>
    %c0_8 = arith.constant 0 : index
    %c0_9 = arith.constant 0 : index
    %c0_10 = arith.constant 0 : index
    %8 = vector.load %arg8[%c0_8, %c0_9, %c0_10] : memref<1x16x128xf32, #tpu.memory_space<vmem>>, vector<1x16x128xf32>
    tpu.vector_store %arg8[%c0_8, %c0_9, %c0_10], %7 {strides = array<i32>} : memref<1x16x128xf32, #tpu.memory_space<vmem>>, vector<1x16x128xf32>,
    %c3_i32 = arith.constant 3 : i32
    %9 = arith.cmpi eq, %arg1, %c3_i32 : i32
    %10 = arith.extui %9 : i1 to i32
    %c0_i32_11 = arith.constant 0 : i32
    %11 = arith.cmpi ne, %10, %c0_i32_11 : i32
    scf.if %11 {
      %c0_12 = arith.constant 0 : index
      %c0_13 = arith.constant 0 : index
      %12 = vector.load %arg3[%c0_12, %c0_13] : memref<4x16xf32, #tpu.memory_space<vmem>>, vector<4x16xf32>
      %c0_14 = arith.constant 0 : index
      %c0_15 = arith.constant 0 : index
      %13 = vector.load %arg4[%c0_14, %c0_15] : memref<4x1xf32, #tpu.memory_space<vmem>>, vector<4x1xf32>
      %c0_16 = arith.constant 0 : index
      %c0_17 = arith.constant 0 : index
      %14 = vector.load %arg5[%c0_16, %c0_17] : memref<16x4xf32, #tpu.memory_space<vmem>>, vector<16x4xf32>
      %c0_18 = arith.constant 0 : index
      %c0_19 = arith.constant 0 : index
      %15 = vector.load %arg6[%c0_18, %c0_19] : memref<16x1xf32, #tpu.memory_space<vmem>>, vector<16x1xf32>
      %c0_20 = arith.constant 0 : index
      %c0_21 = arith.constant 0 : index
      %c0_22 = arith.constant 0 : index
      %16 = vector.load %arg8[%c0_20, %c0_21, %c0_22] : memref<1x16x128xf32, #tpu.memory_space<vmem>>, vector<1x16x128xf32>
      %17 = vector.shape_cast %16 : vector<1x16x128xf32> to vector<16x128xf32>
      %cst = arith.constant dense<0xFF800000> : vector<16xf32>
      %18 = vector.multi_reduction <maximumf>, %17, %cst [1] : vector<16x128xf32> to vector<16xf32>
      %19 = vector.shape_cast %18 : vector<16xf32> to vector<16x1xf32>
      %cst_23 = arith.constant dense<0.000000e+00> : vector<4x1xf32>
      %20 = tpu.matmul %12, %19, %cst_23 {dimension_numbers = #tpu.dot_dimension_numbers<[1], [0], [0], [1], [0, 0, 1, 1], [], []>} : vector<4x16xf32>, vector<16x1xf32>, vector<4x1xf32> -> vector<4x1xf32>
      %21 = arith.addf %20, %13 : vector<4x1xf32>
      %cst_24 = arith.constant 0.000000e+00 : f32
      %22 = vector.broadcast %cst_24 : f32 to vector<4x1xf32>
      %23 = arith.maximumf %21, %22 : vector<4x1xf32>
      %cst_25 = arith.constant dense<0.000000e+00> : vector<16x1xf32>
      %24 = tpu.matmul %14, %23, %cst_25 {dimension_numbers = #tpu.dot_dimension_numbers<[1], [0], [0], [1], [0, 0, 1, 1], [], []>} : vector<16x4xf32>, vector<4x1xf32>, vector<16x1xf32> -> vector<16x1xf32>
      %25 = arith.addf %24, %15 : vector<16x1xf32>
      %26 = arith.negf %25 : vector<16x1xf32>
      %27 = math.exp %26 : vector<16x1xf32>
      %cst_26 = arith.constant 1.000000e+00 : f32
      %28 = vector.broadcast %cst_26 : f32 to vector<16x1xf32>
      %29 = arith.addf %28, %27 : vector<16x1xf32>
      %30 = arith.divf %28, %29 : vector<16x1xf32>
      %c0_27 = arith.constant 0 : index
      %c0_28 = arith.constant 0 : index
      %c0_29 = arith.constant 0 : index
      %31 = vector.load %arg7[%c0_27, %c0_28, %c0_29] : memref<1x16x1xf32, #tpu.memory_space<vmem>>, vector<1x16x1xf32>
      %32 = vector.shape_cast %31 : vector<1x16x1xf32> to vector<16x1xf32>
      %33 = vector.shape_cast %30 : vector<16x1xf32> to vector<1x16x1xf32>
      tpu.vector_store %arg7[%c0_27, %c0_28, %c0_29], %33 {strides = array<i32>} : memref<1x16x1xf32, #tpu.memory_space<vmem>>, vector<1x16x1xf32>,
    } else {
    }
    return
  }
  func.func @transform_0(%arg0: i32, %arg1: i32) -> (i32, i32, i32) {
    %c0_i32 = arith.constant 0 : i32
    %c0_i32_0 = arith.constant 0 : i32
    return %arg0, %c0_i32, %arg1 : i32, i32, i32
  }
  func.func @transform_1(%arg0: i32, %arg1: i32) -> (i32, i32) {
    %c0_i32 = arith.constant 0 : i32
    %c0_i32_0 = arith.constant 0 : i32
    %c0_i32_1 = arith.constant 0 : i32
    return %c0_i32, %c0_i32_0 : i32, i32
  }
  func.func @transform_2(%arg0: i32, %arg1: i32) -> (i32, i32) {
    %c0_i32 = arith.constant 0 : i32
    %c0_i32_0 = arith.constant 0 : i32
    %c0_i32_1 = arith.constant 0 : i32
    return %c0_i32, %c0_i32_0 : i32, i32
  }
  func.func @transform_3(%arg0: i32, %arg1: i32) -> (i32, i32) {
    %c0_i32 = arith.constant 0 : i32
    %c0_i32_0 = arith.constant 0 : i32
    %c0_i32_1 = arith.constant 0 : i32
    return %c0_i32, %c0_i32_0 : i32, i32
  }
  func.func @transform_4(%arg0: i32, %arg1: i32) -> (i32, i32) {
    %c0_i32 = arith.constant 0 : i32
    %c0_i32_0 = arith.constant 0 : i32
    %c0_i32_1 = arith.constant 0 : i32
    return %c0_i32, %c0_i32_0 : i32, i32
  }
  func.func @transform_5(%arg0: i32, %arg1: i32) -> (i32, i32, i32) {
    %c0_i32 = arith.constant 0 : i32
    %c0_i32_0 = arith.constant 0 : i32
    %c0_i32_1 = arith.constant 0 : i32
    return %arg0, %c0_i32, %c0_i32_0 : i32, i32, i32
  }
}

</mosaic_0001>

<llo_original>
// kernel: tpu_custom_call.1
$region0: #{tpu_custom_call.1}
  #allocation0 [shape = 'u32[]', space=smem, size = 0x4, offset = 0x4, fixed_abs, tag = 'smem constant byte address 0x4 - core index']
  #allocation1 [shape = 'u32[72,128]{1,0:T(1,128)}', space=vmem, size = 0x9000, scoped, tag = 'internal scratch']
  #allocation2 [shape = 'f32[1,16,128]{2,1,0:T(8,128)}', space=vmem, size = 0x2000, scoped, tag = 'scratch operand']
  %s0 = inlined_call_operand.hbm [shape: f32[2,16,1024], index: 0, kind: input, shape index: {}]
  %s1 = inlined_call_operand.vmem [shape: f32[4,16], index: 1, kind: input, shape index: {}]
  %s2 = inlined_call_operand.vmem [shape: f32[4,1], index: 2, kind: input, shape index: {}]
  %s3 = inlined_call_operand.vmem [shape: f32[16,4], index: 3, kind: input, shape index: {}]
  %s4 = inlined_call_operand.vmem [shape: f32[16,1], index: 4, kind: input, shape index: {}]
  %s5 = inlined_call_operand.vmem [shape: f32[2,16,1], index: 5, kind: output, shape index: {}]
  %s6 = sld [smem:[#allocation0]]
  $region65: #{tpu_custom_call.1} parent=0
    _
  %s8 = ssub.s32 1, %s6
  %s9 = scalar_select 0, %s8, %s6
  $region1: #{tpu_custom_call.1} parent=0
    #allocation3 [shape = 'u8[32768]{0}', space=vmem, size = 0x8000, scoped, tag = 'input window, operand 0']
    #allocation4 [shape = 's32[2]{0}', space=sflag, size = 0x8, scoped, tag = 'scoped memory for tpu_custom_call.1']
    %10 = vsyncpa [#allocation4], 0
    %s11 = scalar_lea.sflag [#allocation4], 1
    %12 = vsyncpa %s11, 0
    loop: start=0, step=1, limit=10
    $region2: #{tpu_custom_call.1} parent=1 // loop_pre_header
      _
    $region3: #{tpu_custom_call.1} parent=1 // loop_header
      %s14 = sphi 0, %s18
      %p15 = scmp.ge.s32.totalorder %s14, 10
      %s21 = sphi 0, %s33
      %s22 = sphi 0, %s29
      %s23 = sphi 0, %s21
      %s24 = sphi 0, %s22
      %s25 = sphi 0, %s23
      %s26 = sphi 0, %s24
      %s38 = sphi 0, %s40
      %s41 = sphi 0, %s38
      %s42 = sphi 0, %s41
      %s58 = sphi 0, %s42
      %s62 = sphi 0, %s62
      %s64 = sphi 0, %s62
      %s65 = sphi 0, %s64
      %s79 = sphi 0, %s65
      %s83 = sphi 0, %s83
      %s85 = sphi 0, %s83
      %s86 = sphi 0, %s85
      %s100 = sphi 0, %s86
      %s104 = sphi 0, %s104
      %s106 = sphi 0, %s104
      %s107 = sphi 0, %s106
      %s121 = sphi 0, %s107
      %s125 = sphi 0, %s125
      %s127 = sphi 0, %s125
      %s128 = sphi 0, %s127
      %s142 = sphi 0, %s128
      %s148 = sphi 0, %s150
      %s151 = sphi 0, %s148
      %s152 = sphi 0, %s151
      %s168 = sphi 0, %s152
    $region4: #{tpu_custom_call.1} parent=1 // loop_header_branch
      %17 = sbr.rel (%p15) target = $region8
    $region5: #{tpu_custom_call.1} parent=1 // loop_body
      %s19 = ssub.s32 %s14, 1
      %s20 = ssub.s32 %s14, 2
      %s27 = sadd.s32 1, %s22
      %p28 = scmp.ge.s32.totalorder %s27, 4
      %s29 = scalar_select %p28, 0, %s27
      %s30 = sadd.s32 1, %s21
      %s31 = scalar_select %p28, %s30, %s21
      %p32 = scmp.ge.s32.totalorder %s31, 2
      %s33 = scalar_select %p32, 0, %s31
      %s34 = ssub.s32 %s21, %s33
      %s35 = ssub.s32 %s22, %s29
      %s36 = sor.u32 %s34, %s35
      %p37 = scmp.eq.s32.totalorder %s36, 0
      %s39 = sadd.s32 %s38, 1
      %s40 = scalar_select %p37, %s38, %s39
      %p43 = pneg %p37
      %p44 = scmp.eq.s32.totalorder %s14, 7
      %p45 = por %p43, %p44
      %p46 = scmp.ne.s32.totalorder %s38, %s41
      %p47 = scmp.eq.s32.totalorder %s14, 0
      %p48 = por %p46, %p47
      %p49 = scmp.ne.s32.totalorder %s38, %s41
      %p50 = scmp.eq.s32.totalorder %s19, 7
      %p51 = por %p49, %p50
      %p52 = scmp.ne.s32.totalorder %s41, %s42
      %p53 = scmp.eq.s32.totalorder %s19, 0
      %p54 = por %p52, %p53
      %p55 = scmp.ne.s32.totalorder %s41, %s42
      %p56 = scmp.eq.s32.totalorder %s20, 7
      %p57 = por %p55, %p56
      %p59 = scmp.ne.s32.totalorder %s42, %s58
      %p60 = scmp.eq.s32.totalorder %s20, 0
      %p61 = por %p59, %p60
      %s63 = sadd.s32 %s62, 1
      %p66 = scmp.eq.s32.totalorder %s14, 7
      %p67 = scmp.ne.s32.totalorder %s62, %s64
      %p68 = scmp.eq.s32.totalorder %s14, 0
      %p69 = por %p67, %p68
      %p70 = scmp.ne.s32.totalorder %s62, %s64
      %p71 = scmp.eq.s32.totalorder %s19, 7
      %p72 = por %p70, %p71
      %p73 = scmp.ne.s32.totalorder %s64, %s65
      %p74 = scmp.eq.s32.totalorder %s19, 0
      %p75 = por %p73, %p74
      %p76 = scmp.ne.s32.totalorder %s64, %s65
      %p77 = scmp.eq.s32.totalorder %s20, 7
      %p78 = por %p76, %p77
      %p80 = scmp.ne.s32.totalorder %s65, %s79
      %p81 = scmp.eq.s32.totalorder %s20, 0
      %p82 = por %p80, %p81
      %s84 = sadd.s32 %s83, 1
      %p87 = scmp.eq.s32.totalorder %s14, 7
      %p88 = scmp.ne.s32.totalorder %s83, %s85
      %p89 = scmp.eq.s32.totalorder %s14, 0
      %p90 = por %p88, %p89
      %p91 = scmp.ne.s32.totalorder %s83, %s85
      %p92 = scmp.eq.s32.totalorder %s19, 7
      %p93 = por %p91, %p92
      %p94 = scmp.ne.s32.totalorder %s85, %s86
      %p95 = scmp.eq.s32.totalorder %s19, 0
      %p96 = por %p94, %p95
      %p97 = scmp.ne.s32.totalorder %s85, %s86
      %p98 = scmp.eq.s32.totalorder %s20, 7
      %p99 = por %p97, %p98
      %p101 = scmp.ne.s32.totalorder %s86, %s100
      %p102 = scmp.eq.s32.totalorder %s20, 0
      %p103 = por %p101, %p102
      %s105 = sadd.s32 %s104, 1
      %p108 = scmp.eq.s32.totalorder %s14, 7
      %p109 = scmp.ne.s32.totalorder %s104, %s106
      %p110 = scmp.eq.s32.totalorder %s14, 0
      %p111 = por %p109, %p110
      %p112 = scmp.ne.s32.totalorder %s104, %s106
      %p113 = scmp.eq.s32.totalorder %s19, 7
      %p114 = por %p112, %p113
      %p115 = scmp.ne.s32.totalorder %s106, %s107
      %p116 = scmp.eq.s32.totalorder %s19, 0
      %p117 = por %p115, %p116
      %p118 = scmp.ne.s32.totalorder %s106, %s107
      %p119 = scmp.eq.s32.totalorder %s20, 7
      %p120 = por %p118, %p119
      %p122 = scmp.ne.s32.totalorder %s107, %s121
      %p123 = scmp.eq.s32.totalorder %s20, 0
      %p124 = por %p122, %p123
      %s126 = sadd.s32 %s125, 1
      %p129 = scmp.eq.s32.totalorder %s14, 7
      %p130 = scmp.ne.s32.totalorder %s125, %s127
      %p131 = scmp.eq.s32.totalorder %s14, 0
      %p132 = por %p130, %p131
      %p133 = scmp.ne.s32.totalorder %s125, %s127
      %p134 = scmp.eq.s32.totalorder %s19, 7
      %p135 = por %p133, %p134
      %p136 = scmp.ne.s32.totalorder %s127, %s128
      %p137 = scmp.eq.s32.totalorder %s19, 0
      %p138 = por %p136, %p137
      %p139 = scmp.ne.s32.totalorder %s127, %s128
      %p140 = scmp.eq.s32.totalorder %s20, 7
      %p141 = por %p139, %p140
      %p143 = scmp.ne.s32.totalorder %s128, %s142
      %p144 = scmp.eq.s32.totalorder %s20, 0
      %p145 = por %p143, %p144
      %s146 = ssub.s32 %s21, %s33
      %p147 = scmp.eq.s32.totalorder %s146, 0
      %s149 = sadd.s32 %s148, 1
      %s150 = scalar_select %p147, %s148, %s149
      %p153 = pneg %p147
      %p154 = scmp.eq.s32.totalorder %s14, 7
      %p155 = por %p153, %p154
      %p156 = scmp.ne.s32.totalorder %s148, %s151
      %p157 = scmp.eq.s32.totalorder %s14, 0
      %p158 = por %p156, %p157
      %p159 = scmp.ne.s32.totalorder %s148, %s151
      %p160 = scmp.eq.s32.totalorder %s19, 7
      %p161 = por %p159, %p160
      %p162 = scmp.ne.s32.totalorder %s151, %s152
      %p163 = scmp.eq.s32.totalorder %s19, 0
      %p164 = por %p162, %p163
      %p165 = scmp.ne.s32.totalorder %s151, %s152
      %p166 = scmp.eq.s32.totalorder %s20, 7
      %p167 = por %p165, %p166
      %p169 = scmp.ne.s32.totalorder %s152, %s168
      %p170 = scmp.eq.s32.totalorder %s20, 0
      %p171 = por %p169, %p170
      %p172 = scmp.le.s32.totalorder 1, %s14
      %p173 = scmp.lt.s32.totalorder %s14, 9
      %p174 = pnand %p172, %p173
      %p175 = pneg %p174
      // Predicated region
      $region9: #{tpu_custom_call.1} parent=5 // pred_check
        _
      $region10: #{tpu_custom_call.1} parent=5 // pred_check_branch
        %177 = sbr.rel (%p174) target = $region12
      $region11: #{tpu_custom_call.1} parent=5 // pred_region
        %s178 = ssub.s32 %s14, 1
        // Predicated region
        $region13: #{tpu_custom_call.1} parent=11 // pred_check
          %p179 = pneg %p75
        $region14: #{tpu_custom_call.1} parent=11 // pred_check_branch
          %181 = sbr.rel (%p179) target = $region16
        $region15: #{tpu_custom_call.1} parent=11 // pred_region
          _
        $region16: #{tpu_custom_call.1} parent=11 // pred_fallthru
          _
        // Predicated region
        $region17: #{tpu_custom_call.1} parent=11 // pred_check
          %p182 = pneg %p96
        $region18: #{tpu_custom_call.1} parent=11 // pred_check_branch
          %184 = sbr.rel (%p182) target = $region20
        $region19: #{tpu_custom_call.1} parent=11 // pred_region
          _
        $region20: #{tpu_custom_call.1} parent=11 // pred_fallthru
          _
        // Predicated region
        $region21: #{tpu_custom_call.1} parent=11 // pred_check
          %p185 = pneg %p117
        $region22: #{tpu_custom_call.1} parent=11 // pred_check_branch
          %187 = sbr.rel (%p185) target = $region24
        $region23: #{tpu_custom_call.1} parent=11 // pred_region
          _
        $region24: #{tpu_custom_call.1} parent=11 // pred_fallthru
          _
        // Predicated region
        $region25: #{tpu_custom_call.1} parent=11 // pred_check
          %p188 = pneg %p138
        $region26: #{tpu_custom_call.1} parent=11 // pred_check_branch
          %190 = sbr.rel (%p188) target = $region28
        $region27: #{tpu_custom_call.1} parent=11 // pred_region
          _
        $region28: #{tpu_custom_call.1} parent=11 // pred_fallthru
          _
      $region12: #{tpu_custom_call.1} parent=5 // pred_fallthru
        _
      %p191 = scmp.lt.s32.totalorder %s14, 8
      // Predicated region
      $region29: #{tpu_custom_call.1} parent=5 // pred_check
        %p192 = pneg %p191
      $region30: #{tpu_custom_call.1} parent=5 // pred_check_branch
        %194 = sbr.rel (%p192) target = $region32
      $region31: #{tpu_custom_call.1} parent=5 // pred_region
        // Predicated region
        $region33: #{tpu_custom_call.1} parent=31 // pred_check
          %p195 = pneg %p48
        $region34: #{tpu_custom_call.1} parent=31 // pred_check_branch
          %197 = sbr.rel (%p195) target = $region36
        $region35: #{tpu_custom_call.1} parent=31 // pred_region
          %s198 = sand.u32 %s38, 1
          %s199 = scalar_lea.sflag [#allocation4], %s198
          %s200 = sand.u32 %s38, 1
          %s201 = smul.addr %s200, 32
          %s202 = scalar_lea.vmem [#allocation3], %s201
          %s203 = smul.u32 2, %s22
          %205 = vsyncadd %s199, 0
          %s206 = smul.addr %s21, 16
          %s207 = sadd.s32 %s203, %s206
          %s208 = smul.addr %s207, 8
          %s209 = scalar_lea.hbm %s0, %s208
          %s210 = sshll.u32 %s209, 4
          %s211 = int_to_ptr.hbm [resolvable:$true] %s210
          %s212 = sshll.u32 %s202, 4
          %s213 = int_to_ptr.vmem [resolvable:$true] %s212
          %218 = dma.hbm_to_vmem [thread:$0]  %s211, 512, %s213, %s199, 1024, 256, 16
        $region36: #{tpu_custom_call.1} parent=31 // pred_fallthru
          _
      $region32: #{tpu_custom_call.1} parent=5 // pred_fallthru
        _
      %p219 = scmp.le.s32.totalorder 1, %s14
      %p220 = scmp.lt.s32.totalorder %s14, 9
      %p221 = pnand %p219, %p220
      %p222 = pneg %p221
      // Predicated region
      $region37: #{tpu_custom_call.1} parent=5 // pred_check
        _
      $region38: #{tpu_custom_call.1} parent=5 // pred_check_branch
        %224 = sbr.rel (%p221) target = $region40
      $region39: #{tpu_custom_call.1} parent=5 // pred_region
        %s225 = ssub.s32 %s14, 1
        %s226 = sand.u32 %s41, 1
        %s227 = scalar_lea.sflag [#allocation4], %s226
        %s228 = sand.u32 %s41, 1
        %s229 = smul.addr %s228, 32
        %s230 = scalar_lea.vmem [#allocation3], %s229
        // Predicated region
        $region41: #{tpu_custom_call.1} parent=39 // pred_check
          %p231 = pneg %p54
        $region42: #{tpu_custom_call.1} parent=39 // pred_check_branch
          %233 = sbr.rel (%p231) target = $region44
        $region43: #{tpu_custom_call.1} parent=39 // pred_region
          %235 = dma.done %s227, 512
        $region44: #{tpu_custom_call.1} parent=39 // pred_fallthru
          _
        %s236 = sand.u32 %s41, 1
        %s237 = scalar_lea.sflag [#allocation4], %s236
        %s238 = sand.u32 %s41, 1
        %s239 = smul.addr %s238, 32
        %s240 = scalar_lea.vmem [#allocation3], %s239
        %p241 = pneg %p54
        %p242 = pneg %p51
        %p243 = pneg %p75
        %p244 = pneg %p72
        %p245 = pneg %p96
        %p246 = pneg %p93
        %p247 = pneg %p117
        %p248 = pneg %p114
        %p249 = pneg %p138
        %p250 = pneg %p135
        %p251 = pneg %p164
        %p252 = pneg %p161
        %p253 = scmp.lt.s32.totalorder %s23, 1
        %s254 = scalar_select %p253, %s23, 1
        %s255 = smul.addr %s254, 2
        %s256 = smul.addr %s255, 8
        %s257 = scalar_lea.vmem %s5, %s256
        %s258 = smul.u32 2, %s24
        %p259 = scmp.lt.s32.totalorder %s23, 1
        %s260 = scalar_select %p259, %s23, 1
        %s261 = smul.addr %s260, 2
        %s262 = smul.addr %s261, 8
        %s263 = scalar_lea.vmem %s5, %s262
        %p264 = scmp.eq.s32.totalorder %s24, 0
        // Predicated region
        $region45: #{tpu_custom_call.1} parent=39 // pred_check
          %p265 = pneg %p264
        $region46: #{tpu_custom_call.1} parent=39 // pred_check_branch
          %267 = sbr.rel (%p265) target = $region48
        $region47: #{tpu_custom_call.1} parent=39 // pred_region
          %268 = vst [vmem:[#allocation2] sm:$0xff] -inf
          %269 = vst [vmem:[#allocation2 + $0x8] sm:$0xff] -inf
        $region48: #{tpu_custom_call.1} parent=39 // pred_fallthru
          _
        %v270 = vld [vmem:[#allocation2] sm:$0xff]
        %v271 = vld [vmem:[#allocation2 + $0x8] sm:$0xff]
        %v272 = vld [vmem:[%s230] sm:$0xff]
        %v273 = vld [vmem:[%s230 + $0x10] sm:$0xff]
        %v274 = vmax.f32 %v270, %v272
        %v275 = vmax.f32 %v271, %v273
        %v276 = vld [vmem:[%s230 + $0x8] sm:$0xff]
        %v277 = vld [vmem:[%s230 + $0x18] sm:$0xff]
        %v278 = vmax.f32 %v274, %v276
        %v279 = vmax.f32 %v275, %v277
        %280 = vst [vmem:[#allocation2] sm:$0xff] %v278
        %281 = vst [vmem:[#allocation2 + $0x8] sm:$0xff] %v279
        %p282 = scmp.eq.s32.totalorder %s24, 3
        // Predicated region
        $region49: #{tpu_custom_call.1} parent=39 // pred_check
          %p283 = pneg %p282
        $region50: #{tpu_custom_call.1} parent=39 // pred_check_branch
          %285 = sbr.rel (%p283) target = $region52
        $region51: #{tpu_custom_call.1} parent=39 // pred_region
          %v286 = vld [vmem:[%s1] sm:$0xf]
          %v287 = vld [vmem:[%s2] sm:$0xf]
          %v288 = vld [vmem:[%s3] sm:$0xff]
          %v289 = vld [vmem:[%s3 + $0x8] sm:$0xff]
          %v290 = vld [vmem:[%s4] sm:$0xff]
          %v291 = vld [vmem:[%s4 + $0x8] sm:$0xff]
          %v292 = vld [vmem:[#allocation2] sm:$0xff]
          %v293 = vld [vmem:[#allocation2 + $0x8] sm:$0xff]
          %294 = vmax.xlane.f32.xlu0 %v292
          %v295 = vpop.xlane.xlu0 %294
          %296 = vmax.xlane.f32.xlu0 %v293
          %v297 = vpop.xlane.xlu0 %296
          %vm298 = vcmask 130048
          %v300 = vsel %vm298, %v286, 0
          %302 = vmatpush.msra.mxu0 0.0
          %303 = vmatpush.msra.mxu0 0.0
          %304 = vmatpush.msra.mxu0 0.0
          %305 = vmatpush.msra.mxu0 0.0
          %306 = vmatpush.msra.mxu0 0.0
          %307 = vmatpush.msra.mxu0 0.0
          %308 = vmatpush.msra.mxu0 0.0
          %309 = vmatpush.msra.mxu0 0.0
          %310 = vmatpush.msra.mxu0 0.0
          %311 = vmatpush.msra.mxu0 0.0
          %312 = vmatpush.msra.mxu0 0.0
          %313 = vmatpush.msra.mxu0 0.0
          %314 = vmatpush.msra.mxu0 0.0
          %315 = vmatpush.msra.mxu0 0.0
          %316 = vmatpush.msra.mxu0 %v297
          %317 = vmatpush.msra.mxu0 %v295
          %318 = vmatmul.f32.gmra.mxu0 %v300
          %v319 = vpop.f32.mrf.mxu0
          %v320 = vadd.f32 %v287, %v319
          %321 = vdwg.mxu0
          %v322 = vmax.f32 %v320, 0.0
          %vm323 = vcmask 31744
          %v325 = vsel %vm323, %v288, 0
          %v328 = vsel %vm323, %v289, 0
          %vm330 = vcmask 1043456
          %v332 = vsel %vm330, %v322, 0
          %334 = vmatpush.msra.mxu0 0.0
          %335 = vmatpush.msra.mxu0 0.0
          %336 = vmatpush.msra.mxu0 0.0
          %337 = vmatpush.msra.mxu0 0.0
          %338 = vmatpush.msra.mxu0 0.0
          %339 = vmatpush.msra.mxu0 0.0
          %340 = vmatpush.msra.mxu0 0.0
          %341 = vmatpush.msra.mxu0 0.0
          %342 = vmatpush.msra.mxu0 0.0
          %343 = vmatpush.msra.mxu0 0.0
          %344 = vmatpush.msra.mxu0 0.0
          %345 = vmatpush.msra.mxu0 0.0
          %346 = vmatpush.msra.mxu0 0.0
          %347 = vmatpush.msra.mxu0 0.0
          %348 = vmatpush.msra.mxu0 0.0
          %349 = vmatpush.msra.mxu0 %v332
          %350 = vmatmul.f32.gmra.mxu0 %v325
          %v351 = vpop.f32.mrf.mxu0
          %v352 = vadd.f32 %v290, %v351
          %353 = vmatmul.f32.gmra.mxu0 %v328
          %v354 = vpop.f32.mrf.mxu0
          %v355 = vadd.f32 %v291, %v354
          %356 = vdwg.mxu0
          %v357 = vxor.u32 %v352, 2147483648
          %v358 = vxor.u32 %v355, 2147483648
          %v359 = vmul.f32 %v357, 1.442695
          %v360 = vpow.pop %v359
          %v361 = vmul.f32 %v358, 1.442695
          %v362 = vpow.pop %v361
          %v363 = vadd.f32 %v360, 1.0
          %v364 = vadd.f32 %v362, 1.0
          %v365 = vrcp.pop %v363
          %v366 = vmul.f32 %v363, %v365
          %v367 = vsub.f32 1.0, %v366
          %v368 = vmul.f32 %v365, %v367
          %v369 = vadd.f32 %v365, %v368
          %vm370 = vweird.f32 %v363
          %vm371 = vweird.f32 %v365
          %vm372 = vmor %vm370, %vm371
          %v373 = vsel %vm372, %v365, %v369
          %v374 = vand.u32 2147483647, %v363
          %vm375 = vcmp.eq.f32.partialorder %v374, 8.507059e+37
          %v376 = vand.u32 %v363, 2147483648
          %v377 = vor.u32 1.1754944e-38, %v376
          %v378 = vsel %vm375, %v377, %v373
          %v379 = vmul.f32 1.0, %v378
          %v380 = vrcp.pop %v364
          %v381 = vmul.f32 %v364, %v380
          %v382 = vsub.f32 1.0, %v381
          %v383 = vmul.f32 %v380, %v382
          %v384 = vadd.f32 %v380, %v383
          %vm385 = vweird.f32 %v364
          %vm386 = vweird.f32 %v380
          %vm387 = vmor %vm385, %vm386
          %v388 = vsel %vm387, %v380, %v384
          %v389 = vand.u32 2147483647, %v364
          %vm390 = vcmp.eq.f32.partialorder %v389, 8.507059e+37
          %v391 = vand.u32 %v364, 2147483648
          %v392 = vor.u32 1.1754944e-38, %v391
          %v393 = vsel %vm390, %v392, %v388
          %v394 = vmul.f32 1.0, %v393
          %vm395 = vcmask 7168
          %396 = vst.msk [vmem:[%s263] sm:$0xff] %vm395, %v379
          %397 = vst.msk [vmem:[%s263 + $0x8] sm:$0xff] %vm395, %v394
        $region52: #{tpu_custom_call.1} parent=39 // pred_fallthru
          _
        %p398 = scmp.lt.s32.totalorder %s23, 1
        %s399 = scalar_select %p398, %s23, 1
        %s400 = smul.addr %s399, 2
        %s401 = smul.addr %s400, 8
        %s402 = scalar_lea.vmem %s5, %s401
        // Predicated region
        $region53: #{tpu_custom_call.1} parent=39 // pred_check
          %p403 = pneg %p161
        $region54: #{tpu_custom_call.1} parent=39 // pred_check_branch
          %405 = sbr.rel (%p403) target = $region56
        $region55: #{tpu_custom_call.1} parent=39 // pred_region
          _
        $region56: #{tpu_custom_call.1} parent=39 // pred_fallthru
          _
      $region40: #{tpu_custom_call.1} parent=5 // pred_fallthru
        _
      %p406 = scmp.le.s32.totalorder 2, %s14
      // Predicated region
      $region57: #{tpu_custom_call.1} parent=5 // pred_check
        %p407 = pneg %p406
      $region58: #{tpu_custom_call.1} parent=5 // pred_check_branch
        %409 = sbr.rel (%p407) target = $region60
      $region59: #{tpu_custom_call.1} parent=5 // pred_region
        %s410 = ssub.s32 %s14, 2
        // Predicated region
        $region61: #{tpu_custom_call.1} parent=59 // pred_check
          %p411 = pneg %p167
        $region62: #{tpu_custom_call.1} parent=59 // pred_check_branch
          %413 = sbr.rel (%p411) target = $region64
        $region63: #{tpu_custom_call.1} parent=59 // pred_region
          %p414 = scmp.lt.s32.totalorder %s25, 1
          %s415 = scalar_select %p414, %s25, 1
          %s416 = smul.addr %s415, 2
          %s417 = smul.addr %s416, 8
          %s418 = scalar_lea.vmem %s5, %s417
        $region64: #{tpu_custom_call.1} parent=59 // pred_fallthru
          _
      $region60: #{tpu_custom_call.1} parent=5 // pred_fallthru
        _
    $region6: #{tpu_custom_call.1} parent=1 // loop_footer
      %s18 = sadd.s32 1, %s14
    $region7: #{tpu_custom_call.1} parent=1 // loop_footer_branch
      %13 = sbr.rel target = $region3
    $region8: #{tpu_custom_call.1} parent=1 // loop_exit
      _
    %419 = vsyncpa [#allocation4], 1
    %s420 = scalar_lea.sflag [#allocation4], 1
    %421 = vsyncpa %s420, 1

</llo_original>
